<compile_context>
chip_gen: v5e
topology: v5e:2x2
jax: 0.10.0
libtpu: 0.0.40
codegen_flags: <defaults>
</compile_context>

<pallas_src>
import functools

import jax
import jax.numpy as jnp
from jax.experimental import pallas as pl
from jax.experimental.pallas import tpu as pltpu

_LANE = 128


def _round_up(a, b):
    return ((a + b - 1) // b) * b


def _vmem_budget_bytes():
    """~75% of the chip's VMEM (capped at 100 MiB); 48 MiB fallback."""
    try:
        cap = pltpu.get_tpu_info().vmem_capacity_bytes
    except Exception:
        cap = 64 * 1024 * 1024
    return int(min(0.75 * cap, 100 * 1024 * 1024))


def _pick_tile(n, cin, hidden_p, latent, out_wp, budget):
    """Largest node-row tile in {512, 256, 128} whose working set fits VMEM."""
    n128 = _round_up(max(n, 1), _LANE)
    for t in (512, 256, 128):
        if t > n128:
            continue
        n_pad = _round_up(n, t)
        est = (
            2 * t * n_pad * 2                 # adjacency strip (bf16, double-buffered)
            + 2 * n_pad * hidden_p * 2        # resident full H (bf16)
            + 2 * n_pad * cin * 4             # resident full X (f32)
            + 2 * t * (2 * hidden_p * 2 + cin * 4 + latent * 4 + out_wp * 4)
            + 4 * (2 * cin * hidden_p + 2 * hidden_p * 2 * latent
                   + latent * hidden_p + hidden_p * cin)
        )
        if est <= budget:
            return t
    return 128


# ----------------------------------------------------------------------------
# Kernel 1: conv1 (fused neighbor+root weights) + ReLU, tiled over node rows.
# ----------------------------------------------------------------------------
def _conv1_kernel(a_ref, x_ref, xd_ref, w1_ref, b1_ref, h_ref, *, cin):
    # a_ref : [T, Np]    bf16 row strip of row-normalized adjacency
    # x_ref : [Np, Cin]  f32 full node features (aggregation operand)
    # xd_ref: [T, Cin]   f32 diagonal tile of X (root-weight operand)
    # w1_ref: [2*Cin, Hp] fused [W0; W_root], columns zero-padded to Hp
    # b1_ref: [1, Hp]
    # h_ref : [T, Hp]    bf16 hidden features for this row tile
    # NOTE: padded rows (n..n_pad) end up with h = relu(b1) != 0; harmless
    # because their adjacency *columns* are zero and the rows are sliced off.
    f32 = jnp.float32
    agg = jnp.dot(a_ref[...], x_ref[...].astype(jnp.bfloat16),
                  preferred_element_type=f32)                         # [T, Cin]
    w1 = w1_ref[...]
    h = (jnp.dot(agg, w1[:cin, :], preferred_element_type=f32)
         + jnp.dot(xd_ref[...], w1[cin:, :], preferred_element_type=f32)
         + b1_ref[...])
    h_ref[...] = jnp.maximum(h, 0.0).astype(h_ref.dtype)


# ----------------------------------------------------------------------------
# Kernel 2: conv2_mu|logvar (fused) + reparameterize + decoder, packed output.
# ----------------------------------------------------------------------------
def _conv2_decode_kernel(a_ref, h_ref, hd_ref, eps_ref, w2_ref, b2_ref,
                         wf1_ref, bf1_ref, wf2_ref, bf2_ref, out_ref,
                         *, hidden_p, latent, cin, out_wp):
    # a_ref  : [T, Np]      bf16 adjacency row strip
    # h_ref  : [Np, Hp]     bf16 full hidden features from pass 1
    # hd_ref : [T, Hp]      bf16 diagonal tile of H (root-weight operand)
    # eps_ref: [T, L]       f32 reparameterization noise for this tile
    # w2_ref : [2*Hp, 2L]   fused [[W0_mu W0_lv];[Wr_mu Wr_lv]] (rows padded)
    # b2_ref : [1, 2L]      fused [b_mu b_lv]
    # wf1_ref: [L, H], bf1_ref: [1, H]; wf2_ref: [H, Cin], bf2_ref: [1, Cin]
    # out_ref: [T, out_wp]  lane-dense packed (recon | mu | logvar | zero pad)
    f32 = jnp.float32
    agg = jnp.dot(a_ref[...], h_ref[...], preferred_element_type=f32)   # [T, Hp]
    h_t = hd_ref[...].astype(f32)                                        # [T, Hp]
    w2 = w2_ref[...]
    ml = (jnp.dot(agg, w2[:hidden_p, :], preferred_element_type=f32)
          + jnp.dot(h_t, w2[hidden_p:, :], preferred_element_type=f32)
          + b2_ref[...])                                                 # [T, 2L]
    mu = ml[:, :latent]
    logvar = jnp.clip(ml[:, latent:], -10.0, 10.0)

    std = jnp.exp(0.5 * logvar)
    z = mu + eps_ref[...] * std                                          # [T, L]

    d1 = jnp.maximum(
        jnp.dot(z, wf1_ref[...], preferred_element_type=f32) + bf1_ref[...], 0.0)
    recon = jnp.dot(d1, wf2_ref[...], preferred_element_type=f32) + bf2_ref[...]

    # Single full-width store (no masked partial stores).
    pad_w = out_wp - (cin + 2 * latent)
    parts = [recon, mu, logvar]
    if pad_w:
        parts.append(jnp.zeros((recon.shape[0], pad_w), f32))
    out_ref[...] = jnp.concatenate(parts, axis=1)


# ----------------------------------------------------------------------------
# Wrapper
# ----------------------------------------------------------------------------
def graph_vae_forward(packed_params, x, edge_index, eps, *, tile=None):
    """GraphVAE.forward equivalent.

    Args:
      packed_params: dict from pack_params() (fused, lane-padded weights).
      x: [N, Cin] float32 node features.
      edge_index: [2, E] int32 (row 0 = source, row 1 = target), as in PyG.
      eps: [N, L] float32 reparameterization noise (randn_like(std)).
      tile: node-row tile size (multiple of 128); auto-sized to VMEM if None.

    Returns:
      (recon [N, Cin], mu [N, L], logvar [N, L])
    """
    p = packed_params
    n, cin = x.shape
    latent = eps.shape[1]
    hidden_p = p["w1"].shape[1]          # lane-padded hidden width
    hidden = p["wf1"].shape[1]           # true hidden width (decoder fc1 out)
    assert p["w2"].shape[0] == 2 * hidden_p
    out_w = cin + 2 * latent
    out_wp = _round_up(out_w, _LANE)
    f32 = jnp.float32
    bf16 = jnp.bfloat16

    budget = _vmem_budget_bytes()
    if tile is None:
        tile = _pick_tile(n, cin, hidden_p, latent, out_wp, budget)
    n_pad = _round_up(n, tile)
    pad = n_pad - n
    if pad:
        x = jnp.pad(x, ((0, pad), (0, 0)))
        eps = jnp.pad(eps, ((0, pad), (0, 0)))

    # Dense row-normalized adjacency implementing scatter-mean aggregation:
    # A[i, j] = (#edges j->i) / in_degree(i); rows with no in-edges stay zero.
    # Kept in bf16: it is the dominant HBM traffic (read once per pass).
    src = edge_index[0]
    dst = edge_index[1]
    adj = jnp.zeros((n_pad, n_pad), f32).at[dst, src].add(1.0)
    deg = jnp.sum(adj, axis=1, keepdims=True)
    adj = (adj / jnp.where(deg > 0, deg, 1.0)).astype(bf16)

    num_tiles = n_pad // tile
    cparams = pltpu.CompilerParams(
        dimension_semantics=("parallel",),
        vmem_limit_bytes=budget,
    )

    # ---- pass 1: conv1 + relu -> H (bf16, lane-padded) -----------------------
    cost1 = pl.CostEstimate(
        flops=2 * n_pad * n_pad * cin + 2 * 2 * n_pad * cin * hidden_p,
        transcendentals=0,
        bytes_accessed=(2 * n_pad * n_pad + 4 * 2 * n_pad * cin
                        + 4 * (2 * cin + 1) * hidden_p + 2 * n_pad * hidden_p),
    )
    h = pl.pallas_call(
        functools.partial(_conv1_kernel, cin=cin),
        out_shape=jax.ShapeDtypeStruct((n_pad, hidden_p), bf16),
        grid=(num_tiles,),
        in_specs=[
            pl.BlockSpec((tile, n_pad), lambda i: (i, 0)),        # adjacency strip
            pl.BlockSpec((n_pad, cin), lambda i: (0, 0)),         # full X (A @ X)
            pl.BlockSpec((tile, cin), lambda i: (i, 0)),          # diagonal X tile
            pl.BlockSpec((2 * cin, hidden_p), lambda i: (0, 0)),  # fused [W0; Wr]
            pl.BlockSpec((1, hidden_p), lambda i: (0, 0)),        # bias
        ],
        out_specs=pl.BlockSpec((tile, hidden_p), lambda i: (i, 0)),
        compiler_params=cparams,
        cost_estimate=cost1,
    )(adj, x, x, p["w1"], p["b1"])

    # ---- pass 2: conv2_mu|logvar + reparameterize + decoder -------------------
    cost2 = pl.CostEstimate(
        flops=(2 * n_pad * n_pad * hidden_p
               + 2 * 2 * n_pad * hidden_p * (2 * latent)
               + 2 * n_pad * latent * hidden
               + 2 * n_pad * hidden * cin),
        transcendentals=n_pad * latent,
        bytes_accessed=(2 * n_pad * n_pad + 2 * 2 * n_pad * hidden_p
                        + 4 * n_pad * latent
                        + 4 * (2 * hidden_p * 2 * latent + latent * hidden
                               + hidden * cin + 2 * latent + hidden + cin)
                        + 4 * n_pad * out_wp),
    )
    packed = pl.pallas_call(
        functools.partial(_conv2_decode_kernel,
                          hidden_p=hidden_p, latent=latent, cin=cin, out_wp=out_wp),
        out_shape=jax.ShapeDtypeStruct((n_pad, out_wp), f32),
        grid=(num_tiles,),
        in_specs=[
            pl.BlockSpec((tile, n_pad), lambda i: (i, 0)),               # adjacency strip
            pl.BlockSpec((n_pad, hidden_p), lambda i: (0, 0)),           # full H
            pl.BlockSpec((tile, hidden_p), lambda i: (i, 0)),            # diagonal H tile
            pl.BlockSpec((tile, latent), lambda i: (i, 0)),              # eps tile
            pl.BlockSpec((2 * hidden_p, 2 * latent), lambda i: (0, 0)),  # fused W2
            pl.BlockSpec((1, 2 * latent), lambda i: (0, 0)),             # fused b2
            pl.BlockSpec((latent, hidden), lambda i: (0, 0)),            # fc1 W
            pl.BlockSpec((1, hidden), lambda i: (0, 0)),                 # fc1 b
            pl.BlockSpec((hidden, cin), lambda i: (0, 0)),               # fc2 W
            pl.BlockSpec((1, cin), lambda i: (0, 0)),                    # fc2 b
        ],
        out_specs=pl.BlockSpec((tile, out_wp), lambda i: (i, 0)),
        compiler_params=cparams,
        cost_estimate=cost2,
    )(adj, h, h, eps, p["w2"], p["b2"], p["wf1"], p["bf1"], p["wf2"], p["bf2"])

    recon = packed[:n, :cin]
    mu = packed[:n, cin:cin + latent]
    logvar = packed[:n, cin + latent:cin + 2 * latent]
    return recon, mu, logvar


# ----------------------------------------------------------------------------
# Deterministic synthetic parameters (shapes from GraphVAE.__init__)
# ----------------------------------------------------------------------------
def init_params(key, in_channels, hidden_dim, latent_dim):
    ks = jax.random.split(key, 11)
    scale = 0.1
    f32 = jnp.float32
    return {
        # conv1: SplineConv(in_channels -> hidden_dim); pseudo=0 => basis-0
        # weight, root weight and bias only.
        "w0_1": scale * jax.random.normal(ks[0], (in_channels, hidden_dim), f32),
        "wr_1": scale * jax.random.normal(ks[1], (in_channels, hidden_dim), f32),
        "b_1": scale * jax.random.normal(ks[2], (1, hidden_dim), f32),
        # conv2_mu
        "w0_mu": scale * jax.random.normal(ks[3], (hidden_dim, latent_dim), f32),
        "wr_mu": scale * jax.random.normal(ks[4], (hidden_dim, latent_dim), f32),
        "b_mu": scale * jax.random.normal(ks[5], (1, latent_dim), f32),
        # conv2_logvar
        "w0_lv": scale * jax.random.normal(ks[6], (hidden_dim, latent_dim), f32),
        "wr_lv": scale * jax.random.normal(ks[7], (hidden_dim, latent_dim), f32),
        "b_lv": scale * jax.random.normal(ks[8], (1, latent_dim), f32),
        # decoder_fc1: Linear(latent_dim, hidden_dim), stored as [in, out]
        "wf1": scale * jax.random.normal(ks[9], (latent_dim, hidden_dim), f32),
        "bf1": jnp.zeros((1, hidden_dim), f32),
        # decoder_fc2: Linear(hidden_dim, in_channels), stored as [in, out]
        "wf2": scale * jax.random.normal(ks[10], (hidden_dim, in_channels), f32),
        "bf2": jnp.zeros((1, in_channels), f32),
    }


def pack_params(params, *, lane=_LANE):
    """One-time weight fusion + lane padding (done outside the kernel)."""
    in_channels, hidden = params["w0_1"].shape
    hidden_p = _round_up(hidden, lane)
    hp = hidden_p - hidden

    # conv1: fused [W0; W_root], columns zero-padded to hidden_p (padded H
    # columns therefore come out exactly zero after relu, since the bias pad
    # is zero as well).
    w1 = jnp.concatenate(
        [jnp.pad(params["w0_1"], ((0, 0), (0, hp))),
         jnp.pad(params["wr_1"], ((0, 0), (0, hp)))], axis=0)           # [2Cin, Hp]
    b1 = jnp.pad(params["b_1"], ((0, 0), (0, hp)))                       # [1, Hp]

    # conv2_mu | conv2_logvar fused along the output dim; rows zero-padded to
    # hidden_p so the layout matches the padded H produced by pass 1.
    w0_ml = jnp.pad(jnp.concatenate([params["w0_mu"], params["w0_lv"]], axis=1),
                    ((0, hp), (0, 0)))                                   # [Hp, 2L]
    wr_ml = jnp.pad(jnp.concatenate([params["wr_mu"], params["wr_lv"]], axis=1),
                    ((0, hp), (0, 0)))                                   # [Hp, 2L]
    w2 = jnp.concatenate([w0_ml, wr_ml], axis=0)                         # [2Hp, 2L]
    b2 = jnp.concatenate([params["b_mu"], params["b_lv"]], axis=1)       # [1, 2L]

    return {
        "w1": w1, "b1": b1, "w2": w2, "b2": b2,
        "wf1": params["wf1"], "bf1": params["bf1"],
        "wf2": params["wf2"], "bf2": params["bf2"],
    }


def _reference_forward(raw, x, edge_index, eps):
    """Pure-JAX f32 reference of GraphVAE.forward (for tolerance checking)."""
    n = x.shape[0]
    src, dst = edge_index[0], edge_index[1]
    adj = jnp.zeros((n, n), jnp.float32).at[dst, src].add(1.0)
    deg = jnp.sum(adj, axis=1, keepdims=True)
    adj = adj / jnp.where(deg > 0, deg, 1.0)

    def conv(h, w0, wr, b):
        return adj @ (h @ w0) + h @ wr + b

    h = jax.nn.relu(conv(x, raw["w0_1"], raw["wr_1"], raw["b_1"]))
    mu = conv(h, raw["w0_mu"], raw["wr_mu"], raw["b_mu"])
    logvar = jnp.clip(conv(h, raw["w0_lv"], raw["wr_lv"], raw["b_lv"]), -10.0, 10.0)
    z = mu + eps * jnp.exp(0.5 * logvar)
    d1 = jax.nn.relu(z @ raw["wf1"] + raw["bf1"])
    recon = d1 @ raw["wf2"] + raw["bf2"]
    return recon, mu, logvar


if __name__ == "__main__":
    # Small, module-consistent shapes.
    N = 16            # number of graph nodes
    IN_CHANNELS = 4
    HIDDEN = 32
    LATENT = 8

    key = jax.random.PRNGKey(0)
    k_param, k_x, k_eps = jax.random.split(key, 3)

    raw_params = init_params(k_param, IN_CHANNELS, HIDDEN, LATENT)
    params = pack_params(raw_params)

    # Node features.
    x = jax.random.normal(k_x, (N, IN_CHANNELS), jnp.float32)

    # Bidirectional ring graph: edge_index [2, 2N].
    idx = jnp.arange(N, dtype=jnp.int32)
    nxt = (idx + 1) % N
    edge_index = jnp.stack(
        [jnp.concatenate([idx, nxt]), jnp.concatenate([nxt, idx])], axis=0)

    # Reparameterization noise (torch.randn_like(std)).
    eps = jax.random.normal(k_eps, (N, LATENT), jnp.float32)

    recon, mu, logvar = graph_vae_forward(params, x, edge_index, eps)
    jax.block_until_ready((recon, mu, logvar))

    assert recon.shape == (N, IN_CHANNELS)
    assert mu.shape == (N, LATENT)
    assert logvar.shape == (N, LATENT)
    assert bool(jnp.all(jnp.isfinite(recon)))
    assert bool(jnp.all(jnp.isfinite(mu)))
    assert bool(jnp.all(jnp.isfinite(logvar)))

    # Tolerance check vs. pure-JAX f32 reference (bf16 adjacency/H rounding).
    r_ref, m_ref, lv_ref = _reference_forward(raw_params, x, edge_index, eps)
    assert float(jnp.max(jnp.abs(recon - r_ref))) < 5e-2
    assert float(jnp.max(jnp.abs(mu - m_ref))) < 5e-2
    assert float(jnp.max(jnp.abs(logvar - lv_ref))) < 5e-2

    print("KERNEL_OK")
</pallas_src>

<mosaic_0001>
module attributes {stable_mosaic.version = 11 : i64} {
  func.func @_conv1_kernel(%arg0: i32, %arg1: memref<128x128xbf16, #tpu.memory_space<vmem>>, %arg2: memref<128x4xf32, #tpu.memory_space<vmem>>, %arg3: memref<128x4xf32, #tpu.memory_space<vmem>>, %arg4: memref<8x128xf32, #tpu.memory_space<vmem>>, %arg5: memref<1x128xf32, #tpu.memory_space<vmem>>, %arg6: memref<128x128xbf16, #tpu.memory_space<vmem>>) attributes {dimension_semantics = [#tpu.dimension_semantics<parallel>], iteration_bounds = array<i64: 1>, scalar_prefetch = 0 : i64, scratch_operands = 0 : i64, tpu.core_type = #tpu.core_type<tc>, window_params = [{transform_indices = @transform_0, window_bounds = array<i64: 128, 128>}, {pipeline_mode = #tpu.pipeline_mode<synchronous>, transform_indices = @transform_1, window_bounds = array<i64: 128, 4>}, {transform_indices = @transform_2, window_bounds = array<i64: 128, 4>}, {pipeline_mode = #tpu.pipeline_mode<synchronous>, transform_indices = @transform_3, window_bounds = array<i64: 8, 128>}, {pipeline_mode = #tpu.pipeline_mode<synchronous>, transform_indices = @transform_4, window_bounds = array<i64: 1, 128>}, {transform_indices = @transform_5, window_bounds = array<i64: 128, 128>}]} {
    %c0 = arith.constant 0 : index
    %c0_0 = arith.constant 0 : index
    %0 = vector.load %arg1[%c0, %c0_0] : memref<128x128xbf16, #tpu.memory_space<vmem>>, vector<128x128xbf16>
    %c0_1 = arith.constant 0 : index
    %c0_2 = arith.constant 0 : index
    %1 = vector.load %arg2[%c0_1, %c0_2] : memref<128x4xf32, #tpu.memory_space<vmem>>, vector<128x4xf32>
    %2 = arith.truncf %1 : vector<128x4xf32> to vector<128x4xbf16>
    %cst = arith.constant dense<0.000000e+00> : vector<128x4xf32>
    %3 = tpu.matmul %0, %2, %cst {dimension_numbers = #tpu.dot_dimension_numbers<[1], [0], [0], [1], [0, 0, 1, 1], [], []>} : vector<128x128xbf16>, vector<128x4xbf16>, vector<128x4xf32> -> vector<128x4xf32>
    %c0_3 = arith.constant 0 : index
    %c0_4 = arith.constant 0 : index
    %4 = vector.load %arg4[%c0_3, %c0_4] : memref<8x128xf32, #tpu.memory_space<vmem>>, vector<8x128xf32>
    %5 = vector.extract_strided_slice %4 {offsets = [0, 0], sizes = [4, 128], strides = [1, 1]} : vector<8x128xf32> to vector<4x128xf32>
    %cst_5 = arith.constant dense<0.000000e+00> : vector<128x128xf32>
    %6 = tpu.matmul %3, %5, %cst_5 {dimension_numbers = #tpu.dot_dimension_numbers<[1], [0], [0], [1], [0, 0, 1, 1], [], []>} : vector<128x4xf32>, vector<4x128xf32>, vector<128x128xf32> -> vector<128x128xf32>
    %c0_6 = arith.constant 0 : index
    %c0_7 = arith.constant 0 : index
    %7 = vector.load %arg3[%c0_6, %c0_7] : memref<128x4xf32, #tpu.memory_space<vmem>>, vector<128x4xf32>
    %8 = vector.extract_strided_slice %4 {offsets = [4, 0], sizes = [4, 128], strides = [1, 1]} : vector<8x128xf32> to vector<4x128xf32>
    %cst_8 = arith.constant dense<0.000000e+00> : vector<128x128xf32>
    %9 = tpu.matmul %7, %8, %cst_8 {dimension_numbers = #tpu.dot_dimension_numbers<[1], [0], [0], [1], [0, 0, 1, 1], [], []>} : vector<128x4xf32>, vector<4x128xf32>, vector<128x128xf32> -> vector<128x128xf32>
    %10 = arith.addf %6, %9 : vector<128x128xf32>
    %c0_9 = arith.constant 0 : index
    %c0_10 = arith.constant 0 : index
    %11 = vector.load %arg5[%c0_9, %c0_10] : memref<1x128xf32, #tpu.memory_space<vmem>>, vector<1x128xf32>
    %12 = vector.broadcast %11 : vector<1x128xf32> to vector<128x128xf32>
    %13 = arith.addf %10, %12 : vector<128x128xf32>
    %cst_11 = arith.constant 0.000000e+00 : f32
    %14 = vector.broadcast %cst_11 : f32 to vector<128x128xf32>
    %15 = arith.maximumf %13, %14 : vector<128x128xf32>
    %16 = arith.truncf %15 : vector<128x128xf32> to vector<128x128xbf16>
    %c0_12 = arith.constant 0 : index
    %c0_13 = arith.constant 0 : index
    %17 = vector.load %arg6[%c0_12, %c0_13] : memref<128x128xbf16, #tpu.memory_space<vmem>>, vector<128x128xbf16>
    tpu.vector_store %arg6[%c0_12, %c0_13], %16 {strides = array<i32>} : memref<128x128xbf16, #tpu.memory_space<vmem>>, vector<128x128xbf16>,
    return
  }
  func.func @transform_0(%arg0: i32) -> (i32, i32) {
    %c0_i32 = arith.constant 0 : i32
    %c0_i32_0 = arith.constant 0 : i32
    return %arg0, %c0_i32 : i32, i32
  }
  func.func @transform_1(%arg0: i32) -> (i32, i32) {
    %c0_i32 = arith.constant 0 : i32
    %c0_i32_0 = arith.constant 0 : i32
    %c0_i32_1 = arith.constant 0 : i32
    return %c0_i32, %c0_i32_0 : i32, i32
  }
  func.func @transform_2(%arg0: i32) -> (i32, i32) {
    %c0_i32 = arith.constant 0 : i32
    %c0_i32_0 = arith.constant 0 : i32
    return %arg0, %c0_i32 : i32, i32
  }
  func.func @transform_3(%arg0: i32) -> (i32, i32) {
    %c0_i32 = arith.constant 0 : i32
    %c0_i32_0 = arith.constant 0 : i32
    %c0_i32_1 = arith.constant 0 : i32
    return %c0_i32, %c0_i32_0 : i32, i32
  }
  func.func @transform_4(%arg0: i32) -> (i32, i32) {
    %c0_i32 = arith.constant 0 : i32
    %c0_i32_0 = arith.constant 0 : i32
    %c0_i32_1 = arith.constant 0 : i32
    return %c0_i32, %c0_i32_0 : i32, i32
  }
  func.func @transform_5(%arg0: i32) -> (i32, i32) {
    %c0_i32 = arith.constant 0 : i32
    %c0_i32_0 = arith.constant 0 : i32
    return %arg0, %c0_i32 : i32, i32
  }
}

</mosaic_0001>

<llo_original>
// kernel: tpu_custom_call.1
$region0: #{tpu_custom_call.1}
  #allocation0 [shape = 'u32[]', space=smem, size = 0x4, offset = 0x4, fixed_abs, tag = 'smem constant byte address 0x4 - core index']
  #allocation1 [shape = 'u32[72,128]{1,0:T(1,128)}', space=vmem, size = 0x9000, scoped, tag = 'internal scratch']
  %s0 = inlined_call_operand.vmem [shape: bf16[128,128], index: 0, kind: input, shape index: {}]
  %s1 = inlined_call_operand.vmem [shape: f32[128,4], index: 1, kind: input, shape index: {}]
  %s2 = inlined_call_operand.vmem [shape: f32[128,4], index: 2, kind: input, shape index: {}]
  %s3 = inlined_call_operand.vmem [shape: f32[8,128], index: 3, kind: input, shape index: {}]
  %s4 = inlined_call_operand.vmem [shape: f32[1,128], index: 4, kind: input, shape index: {}]
  %s5 = inlined_call_operand.hbm [shape: bf16[128,128], index: 5, kind: output, shape index: {}]
  %s6 = sld [smem:[#allocation0]]
  $region30: #{tpu_custom_call.1} parent=0
    _
  %s8 = ssub.s32 1, %s6
  %s9 = scalar_select 0, %s8, %s6
  $region1: #{tpu_custom_call.1} parent=0
    #allocation2 [shape = 'u8[32768]{0}', space=vmem, size = 0x8000, scoped, tag = 'output window, operand 0, single buffered']
    #allocation3 [shape = 's32[1]{0}', space=sflag, size = 0x4, scoped, tag = 'scoped memory for tpu_custom_call.1']
    %10 = vsyncpa [#allocation3], 0
    // Predicated region
    $region2: #{tpu_custom_call.1} parent=1 // pred_check
      _
    $region3: #{tpu_custom_call.1} parent=1 // pred_check_branch
      %12 = sbr.rel (0) target = $region5
    $region4: #{tpu_custom_call.1} parent=1 // pred_region
      _
    $region5: #{tpu_custom_call.1} parent=1 // pred_fallthru
      _
    // Predicated region
    $region6: #{tpu_custom_call.1} parent=1 // pred_check
      _
    $region7: #{tpu_custom_call.1} parent=1 // pred_check_branch
      %14 = sbr.rel (0) target = $region9
    $region8: #{tpu_custom_call.1} parent=1 // pred_region
      _
    $region9: #{tpu_custom_call.1} parent=1 // pred_fallthru
      _
    // Predicated region
    $region10: #{tpu_custom_call.1} parent=1 // pred_check
      _
    $region11: #{tpu_custom_call.1} parent=1 // pred_check_branch
      %16 = sbr.rel (0) target = $region13
    $region12: #{tpu_custom_call.1} parent=1 // pred_region
      _
    $region13: #{tpu_custom_call.1} parent=1 // pred_fallthru
      _
    // Predicated region
    $region14: #{tpu_custom_call.1} parent=1 // pred_check
      _
    $region15: #{tpu_custom_call.1} parent=1 // pred_check_branch
      %18 = sbr.rel (0) target = $region17
    $region16: #{tpu_custom_call.1} parent=1 // pred_region
      _
    $region17: #{tpu_custom_call.1} parent=1 // pred_fallthru
      _
    // Predicated region
    $region18: #{tpu_custom_call.1} parent=1 // pred_check
      _
    $region19: #{tpu_custom_call.1} parent=1 // pred_check_branch
      %20 = sbr.rel (0) target = $region21
    $region20: #{tpu_custom_call.1} parent=1 // pred_region
      _
    $region21: #{tpu_custom_call.1} parent=1 // pred_fallthru
      _
    %v21 = vld [vmem:[%s0] sm:$0xf]
    %v22 = vld [vmem:[%s0 + $0x4] sm:$0xf]
    %v23 = vld [vmem:[%s0 + $0x8] sm:$0xf]
    %v24 = vld [vmem:[%s0 + $0xc] sm:$0xf]
    %v25 = vld [vmem:[%s0 + $0x10] sm:$0xf]
    %v26 = vld [vmem:[%s0 + $0x14] sm:$0xf]
    %v27 = vld [vmem:[%s0 + $0x18] sm:$0xf]
    %v28 = vld [vmem:[%s0 + $0x1c] sm:$0xf]
    %v29 = vld [vmem:[%s0 + $0x20] sm:$0xf]
    %v30 = vld [vmem:[%s0 + $0x24] sm:$0xf]
    %v31 = vld [vmem:[%s0 + $0x28] sm:$0xf]
    %v32 = vld [vmem:[%s0 + $0x2c] sm:$0xf]
    %v33 = vld [vmem:[%s0 + $0x30] sm:$0xf]
    %v34 = vld [vmem:[%s0 + $0x34] sm:$0xf]
    %v35 = vld [vmem:[%s0 + $0x38] sm:$0xf]
    %v36 = vld [vmem:[%s0 + $0x3c] sm:$0xf]
    %v37 = vld [vmem:[%s1] sm:$0xff]
    %v38 = vld [vmem:[%s1 + $0x8] sm:$0xff]
    %v39 = vld [vmem:[%s1 + $0x10] sm:$0xff]
    %v40 = vld [vmem:[%s1 + $0x18] sm:$0xff]
    %v41 = vld [vmem:[%s1 + $0x20] sm:$0xff]
    %v42 = vld [vmem:[%s1 + $0x28] sm:$0xff]
    %v43 = vld [vmem:[%s1 + $0x30] sm:$0xff]
    %v44 = vld [vmem:[%s1 + $0x38] sm:$0xff]
    %v45 = vld [vmem:[%s1 + $0x40] sm:$0xff]
    %v46 = vld [vmem:[%s1 + $0x48] sm:$0xff]
    %v47 = vld [vmem:[%s1 + $0x50] sm:$0xff]
    %v48 = vld [vmem:[%s1 + $0x58] sm:$0xff]
    %v49 = vld [vmem:[%s1 + $0x60] sm:$0xff]
    %v50 = vld [vmem:[%s1 + $0x68] sm:$0xff]
    %v51 = vld [vmem:[%s1 + $0x70] sm:$0xff]
    %v52 = vld [vmem:[%s1 + $0x78] sm:$0xff]
    %v53 = vpack.c.bf16 %v38, %v37
    %v54 = vpack.c.bf16 %v40, %v39
    %v55 = vpack.c.bf16 %v42, %v41
    %v56 = vpack.c.bf16 %v44, %v43
    %v57 = vpack.c.bf16 %v46, %v45
    %v58 = vpack.c.bf16 %v48, %v47
    %v59 = vpack.c.bf16 %v50, %v49
    %v60 = vpack.c.bf16 %v52, %v51
    %v77 = vunpack.c.l.b16 %v21
    %v78 = vunpack.c.l.b16 %v22
    %v79 = vunpack.c.l.b16 %v23
    %v80 = vunpack.c.l.b16 %v24
    %v81 = vunpack.c.l.b16 %v25
    %v82 = vunpack.c.l.b16 %v26
    %v83 = vunpack.c.l.b16 %v27
    %v84 = vunpack.c.l.b16 %v28
    %v85 = vunpack.c.l.b16 %v29
    %v86 = vunpack.c.l.b16 %v30
    %v87 = vunpack.c.l.b16 %v31
    %v88 = vunpack.c.l.b16 %v32
    %v89 = vunpack.c.l.b16 %v33
    %v90 = vunpack.c.l.b16 %v34
    %v91 = vunpack.c.l.b16 %v35
    %v92 = vunpack.c.l.b16 %v36
    %v93 = vpack.c.b16 %v78, %v77
    %v94 = vpack.c.b16 %v80, %v79
    %v95 = vpack.c.b16 %v82, %v81
    %v96 = vpack.c.b16 %v84, %v83
    %v97 = vpack.c.b16 %v86, %v85
    %v98 = vpack.c.b16 %v88, %v87
    %v99 = vpack.c.b16 %v90, %v89
    %v100 = vpack.c.b16 %v92, %v91
    %109 = vmatpush.bf16.msra.mxu0 %v60
    %110 = vmatpush.bf16.msra.mxu0 %v59
    %111 = vmatpush.bf16.msra.mxu0 %v58
    %112 = vmatpush.bf16.msra.mxu0 %v57
    %113 = vmatpush.bf16.msra.mxu0 %v56
    %114 = vmatpush.bf16.msra.mxu0 %v55
    %115 = vmatpush.bf16.msra.mxu0 %v54
    %116 = vmatpush.bf16.msra.mxu0 %v53
    %117 = vmatmul.bf16.gmra.mxu0 %v93
    %v118 = vpop.f32.mrf.mxu0
    %v119 = vadd.f32 0.0, %v118
    %v120 = vpop.f32.mrf.mxu0
    %v121 = vadd.f32 0.0, %v120
    %122 = vmatmul.bf16.gmra.mxu0 %v94
    %v123 = vpop.f32.mrf.mxu0
    %v124 = vadd.f32 0.0, %v123
    %v125 = vpop.f32.mrf.mxu0
    %v126 = vadd.f32 0.0, %v125
    %127 = vmatmul.bf16.gmra.mxu0 %v95
    %v128 = vpop.f32.mrf.mxu0
    %v129 = vadd.f32 0.0, %v128
    %v130 = vpop.f32.mrf.mxu0
    %v131 = vadd.f32 0.0, %v130
    %132 = vmatmul.bf16.gmra.mxu0 %v96
    %v133 = vpop.f32.mrf.mxu0
    %v134 = vadd.f32 0.0, %v133
    %v135 = vpop.f32.mrf.mxu0
    %v136 = vadd.f32 0.0, %v135
    %137 = vmatmul.bf16.gmra.mxu0 %v97
    %v138 = vpop.f32.mrf.mxu0
    %v139 = vadd.f32 0.0, %v138
    %v140 = vpop.f32.mrf.mxu0
    %v141 = vadd.f32 0.0, %v140
    %142 = vmatmul.bf16.gmra.mxu0 %v98
    %v143 = vpop.f32.mrf.mxu0
    %v144 = vadd.f32 0.0, %v143
    %v145 = vpop.f32.mrf.mxu0
    %v146 = vadd.f32 0.0, %v145
    %147 = vmatmul.bf16.gmra.mxu0 %v99
    %v148 = vpop.f32.mrf.mxu0
    %v149 = vadd.f32 0.0, %v148
    %v150 = vpop.f32.mrf.mxu0
    %v151 = vadd.f32 0.0, %v150
    %152 = vmatmul.bf16.gmra.mxu0 %v100
    %v153 = vpop.f32.mrf.mxu0
    %v154 = vadd.f32 0.0, %v153
    %v155 = vpop.f32.mrf.mxu0
    %v156 = vadd.f32 0.0, %v155
    %157 = vdwg.mxu0
    %v158 = vld [vmem:[%s3] sm:$0xff]
    %v159 = vld [vmem:[%s2] sm:$0xff]
    %v160 = vld [vmem:[%s2 + $0x8] sm:$0xff]
    %v161 = vld [vmem:[%s2 + $0x10] sm:$0xff]
    %v162 = vld [vmem:[%s2 + $0x18] sm:$0xff]
    %v163 = vld [vmem:[%s2 + $0x20] sm:$0xff]
    %v164 = vld [vmem:[%s2 + $0x28] sm:$0xff]
    %v165 = vld [vmem:[%s2 + $0x30] sm:$0xff]
    %v166 = vld [vmem:[%s2 + $0x38] sm:$0xff]
    %v167 = vld [vmem:[%s2 + $0x40] sm:$0xff]
    %v168 = vld [vmem:[%s2 + $0x48] sm:$0xff]
    %v169 = vld [vmem:[%s2 + $0x50] sm:$0xff]
    %v170 = vld [vmem:[%s2 + $0x58] sm:$0xff]
    %v171 = vld [vmem:[%s2 + $0x60] sm:$0xff]
    %v172 = vld [vmem:[%s2 + $0x68] sm:$0xff]
    %v173 = vld [vmem:[%s2 + $0x70] sm:$0xff]
    %v174 = vld [vmem:[%s2 + $0x78] sm:$0xff]
    %v176 = vrot.slane %v158, 4
    %vm177 = vcmask 31744
    %v179 = vsel %vm177, %v159, 0
    %v182 = vsel %vm177, %v160, 0
    %v185 = vsel %vm177, %v161, 0
    %v188 = vsel %vm177, %v162, 0
    %v191 = vsel %vm177, %v163, 0
    %v194 = vsel %vm177, %v164, 0
    %v197 = vsel %vm177, %v165, 0
    %v200 = vsel %vm177, %v166, 0
    %v203 = vsel %vm177, %v167, 0
    %v206 = vsel %vm177, %v168, 0
    %v209 = vsel %vm177, %v169, 0
    %v212 = vsel %vm177, %v170, 0
    %v215 = vsel %vm177, %v171, 0
    %v218 = vsel %vm177, %v172, 0
    %v221 = vsel %vm177, %v173, 0
    %v224 = vsel %vm177, %v174, 0
    %vm226 = vcmask 1043456
    %v227 = vsel %vm226, %v176, 0
    %229 = vmatpush.msra.mxu0 0.0
    %230 = vmatpush.msra.mxu0 0.0
    %231 = vmatpush.msra.mxu0 0.0
    %232 = vmatpush.msra.mxu0 0.0
    %233 = vmatpush.msra.mxu0 0.0
    %234 = vmatpush.msra.mxu0 0.0
    %235 = vmatpush.msra.mxu0 0.0
    %236 = vmatpush.msra.mxu0 0.0
    %237 = vmatpush.msra.mxu0 0.0
    %238 = vmatpush.msra.mxu0 0.0
    %239 = vmatpush.msra.mxu0 0.0
    %240 = vmatpush.msra.mxu0 0.0
    %241 = vmatpush.msra.mxu0 0.0
    %242 = vmatpush.msra.mxu0 0.0
    %243 = vmatpush.msra.mxu0 0.0
    %244 = vmatpush.msra.mxu0 %v227
    %245 = vmatmul.f32.gmra.mxu0 %v179
    %v246 = vpop.f32.mrf.mxu0
    %v247 = vadd.f32 0.0, %v246
    %248 = vmatmul.f32.gmra.mxu0 %v182
    %v249 = vpop.f32.mrf.mxu0
    %v250 = vadd.f32 0.0, %v249
    %251 = vmatmul.f32.gmra.mxu0 %v185
    %v252 = vpop.f32.mrf.mxu0
    %v253 = vadd.f32 0.0, %v252
    %254 = vmatmul.f32.gmra.mxu0 %v188
    %v255 = vpop.f32.mrf.mxu0
    %v256 = vadd.f32 0.0, %v255
    %257 = vmatmul.f32.gmra.mxu0 %v191
    %v258 = vpop.f32.mrf.mxu0
    %v259 = vadd.f32 0.0, %v258
    %260 = vmatmul.f32.gmra.mxu0 %v194
    %v261 = vpop.f32.mrf.mxu0
    %v262 = vadd.f32 0.0, %v261
    %263 = vmatmul.f32.gmra.mxu0 %v197
    %v264 = vpop.f32.mrf.mxu0
    %v265 = vadd.f32 0.0, %v264
    %266 = vmatmul.f32.gmra.mxu0 %v200
    %v267 = vpop.f32.mrf.mxu0
    %v268 = vadd.f32 0.0, %v267
    %269 = vmatmul.f32.gmra.mxu0 %v203
    %v270 = vpop.f32.mrf.mxu0
    %v271 = vadd.f32 0.0, %v270
    %272 = vmatmul.f32.gmra.mxu0 %v206
    %v273 = vpop.f32.mrf.mxu0
    %v274 = vadd.f32 0.0, %v273
    %275 = vmatmul.f32.gmra.mxu0 %v209
    %v276 = vpop.f32.mrf.mxu0
    %v277 = vadd.f32 0.0, %v276
    %278 = vmatmul.f32.gmra.mxu0 %v212
    %v279 = vpop.f32.mrf.mxu0
    %v280 = vadd.f32 0.0, %v279
    %281 = vmatmul.f32.gmra.mxu0 %v215
    %v282 = vpop.f32.mrf.mxu0
    %v283 = vadd.f32 0.0, %v282
    %284 = vmatmul.f32.gmra.mxu0 %v218
    %v285 = vpop.f32.mrf.mxu0
    %v286 = vadd.f32 0.0, %v285
    %287 = vmatmul.f32.gmra.mxu0 %v221
    %v288 = vpop.f32.mrf.mxu0
    %v289 = vadd.f32 0.0, %v288
    %290 = vmatmul.f32.gmra.mxu0 %v224
    %v291 = vpop.f32.mrf.mxu0
    %v292 = vadd.f32 0.0, %v291
    %293 = vdwg.mxu0
    %v295 = vsel %vm177, %v119, 0
    %v298 = vsel %vm177, %v121, 0
    %v301 = vsel %vm177, %v124, 0
    %v304 = vsel %vm177, %v126, 0
    %v307 = vsel %vm177, %v129, 0
    %v310 = vsel %vm177, %v131, 0
    %v313 = vsel %vm177, %v134, 0
    %v316 = vsel %vm177, %v136, 0
    %v319 = vsel %vm177, %v139, 0
    %v322 = vsel %vm177, %v141, 0
    %v325 = vsel %vm177, %v144, 0
    %v328 = vsel %vm177, %v146, 0
    %v331 = vsel %vm177, %v149, 0
    %v334 = vsel %vm177, %v151, 0
    %v337 = vsel %vm177, %v154, 0
    %v340 = vsel %vm177, %v156, 0
    %v342 = vsel %vm226, %v158, 0
    %344 = vmatpush.msra.mxu0 0.0
    %345 = vmatpush.msra.mxu0 0.0
    %346 = vmatpush.msra.mxu0 0.0
    %347 = vmatpush.msra.mxu0 0.0
    %348 = vmatpush.msra.mxu0 0.0
    %349 = vmatpush.msra.mxu0 0.0
    %350 = vmatpush.msra.mxu0 0.0
    %351 = vmatpush.msra.mxu0 0.0
    %352 = vmatpush.msra.mxu0 0.0
    %353 = vmatpush.msra.mxu0 0.0
    %354 = vmatpush.msra.mxu0 0.0
    %355 = vmatpush.msra.mxu0 0.0
    %356 = vmatpush.msra.mxu0 0.0
    %357 = vmatpush.msra.mxu0 0.0
    %358 = vmatpush.msra.mxu0 0.0
    %359 = vmatpush.msra.mxu0 %v342
    %360 = vmatmul.f32.gmra.mxu0 %v295
    %v361 = vpop.f32.mrf.mxu0
    %v362 = vadd.f32 %v247, %v361
    %363 = vmatmul.f32.gmra.mxu0 %v298
    %v364 = vpop.f32.mrf.mxu0
    %v365 = vadd.f32 %v250, %v364
    %366 = vmatmul.f32.gmra.mxu0 %v301
    %v367 = vpop.f32.mrf.mxu0
    %v368 = vadd.f32 %v253, %v367
    %369 = vmatmul.f32.gmra.mxu0 %v304
    %v370 = vpop.f32.mrf.mxu0
    %v371 = vadd.f32 %v256, %v370
    %372 = vmatmul.f32.gmra.mxu0 %v307
    %v373 = vpop.f32.mrf.mxu0
    %v374 = vadd.f32 %v259, %v373
    %375 = vmatmul.f32.gmra.mxu0 %v310
    %v376 = vpop.f32.mrf.mxu0
    %v377 = vadd.f32 %v262, %v376
    %378 = vmatmul.f32.gmra.mxu0 %v313
    %v379 = vpop.f32.mrf.mxu0
    %v380 = vadd.f32 %v265, %v379
    %381 = vmatmul.f32.gmra.mxu0 %v316
    %v382 = vpop.f32.mrf.mxu0
    %v383 = vadd.f32 %v268, %v382
    %384 = vmatmul.f32.gmra.mxu0 %v319
    %v385 = vpop.f32.mrf.mxu0
    %v386 = vadd.f32 %v271, %v385
    %387 = vmatmul.f32.gmra.mxu0 %v322
    %v388 = vpop.f32.mrf.mxu0
    %v389 = vadd.f32 %v274, %v388
    %390 = vmatmul.f32.gmra.mxu0 %v325
    %v391 = vpop.f32.mrf.mxu0
    %v392 = vadd.f32 %v277, %v391
    %393 = vmatmul.f32.gmra.mxu0 %v328
    %v394 = vpop.f32.mrf.mxu0
    %v395 = vadd.f32 %v280, %v394
    %396 = vmatmul.f32.gmra.mxu0 %v331
    %v397 = vpop.f32.mrf.mxu0
    %v398 = vadd.f32 %v283, %v397
    %399 = vmatmul.f32.gmra.mxu0 %v334
    %v400 = vpop.f32.mrf.mxu0
    %v401 = vadd.f32 %v286, %v400
    %402 = vmatmul.f32.gmra.mxu0 %v337
    %v403 = vpop.f32.mrf.mxu0
    %v404 = vadd.f32 %v289, %v403
    %405 = vmatmul.f32.gmra.mxu0 %v340
    %v406 = vpop.f32.mrf.mxu0
    %v407 = vadd.f32 %v292, %v406
    %408 = vdwg.mxu0
    %v409 = vld [vmem:[%s4] sm:$0x1]
    %v411 = vperm.slane %v409, 0
    %v413 = vadd.f32 %v362, %v411
    %v414 = vadd.f32 %v365, %v411
    %v415 = vadd.f32 %v368, %v411
    %v416 = vadd.f32 %v371, %v411
    %v417 = vadd.f32 %v374, %v411
    %v418 = vadd.f32 %v377, %v411
    %v419 = vadd.f32 %v380, %v411
    %v420 = vadd.f32 %v383, %v411
    %v421 = vadd.f32 %v386, %v411
    %v422 = vadd.f32 %v389, %v411
    %v423 = vadd.f32 %v392, %v411
    %v424 = vadd.f32 %v395, %v411
    %v425 = vadd.f32 %v398, %v411
    %v426 = vadd.f32 %v401, %v411
    %v427 = vadd.f32 %v404, %v411
    %v428 = vadd.f32 %v407, %v411
    %v429 = vmax.f32 %v413, 0.0
    %v430 = vmax.f32 %v414, 0.0
    %v431 = vmax.f32 %v415, 0.0
    %v432 = vmax.f32 %v416, 0.0
    %v433 = vmax.f32 %v417, 0.0
    %v434 = vmax.f32 %v418, 0.0
    %v435 = vmax.f32 %v419, 0.0
    %v436 = vmax.f32 %v420, 0.0
    %v437 = vmax.f32 %v421, 0.0
    %v438 = vmax.f32 %v422, 0.0
    %v439 = vmax.f32 %v423, 0.0
    %v440 = vmax.f32 %v424, 0.0
    %v441 = vmax.f32 %v425, 0.0
    %v442 = vmax.f32 %v426, 0.0
    %v443 = vmax.f32 %v427, 0.0
    %v444 = vmax.f32 %v428, 0.0
    %v445 = vpack.c.bf16 %v429, %v429
    %v446 = vpack.c.bf16 %v430, %v430
    %v447 = vpack.c.bf16 %v431, %v431
    %v448 = vpack.c.bf16 %v432, %v432
    %v449 = vpack.c.bf16 %v433, %v433
    %v450 = vpack.c.bf16 %v434, %v434
    %v451 = vpack.c.bf16 %v435, %v435
    %v452 = vpack.c.bf16 %v436, %v436
    %v453 = vpack.c.bf16 %v437, %v437
    %v454 = vpack.c.bf16 %v438, %v438
    %v455 = vpack.c.bf16 %v439, %v439
    %v456 = vpack.c.bf16 %v440, %v440
    %v457 = vpack.c.bf16 %v441, %v441
    %v458 = vpack.c.bf16 %v442, %v442
    %v459 = vpack.c.bf16 %v443, %v443
    %v460 = vpack.c.bf16 %v444, %v444
    %461 = vst [vmem:[#allocation2] sm:$0xf] %v445
    %462 = vst [vmem:[#allocation2 + $0x4] sm:$0xf] %v446
    %463 = vst [vmem:[#allocation2 + $0x8] sm:$0xf] %v447
    %464 = vst [vmem:[#allocation2 + $0xc] sm:$0xf] %v448
    %465 = vst [vmem:[#allocation2 + $0x10] sm:$0xf] %v449
    %466 = vst [vmem:[#allocation2 + $0x14] sm:$0xf] %v450
    %467 = vst [vmem:[#allocation2 + $0x18] sm:$0xf] %v451
    %468 = vst [vmem:[#allocation2 + $0x1c] sm:$0xf] %v452
    %469 = vst [vmem:[#allocation2 + $0x20] sm:$0xf] %v453
    %470 = vst [vmem:[#allocation2 + $0x24] sm:$0xf] %v454
    %471 = vst [vmem:[#allocation2 + $0x28] sm:$0xf] %v455
    %472 = vst [vmem:[#allocation2 + $0x2c] sm:$0xf] %v456
    %473 = vst [vmem:[#allocation2 + $0x30] sm:$0xf] %v457
    %474 = vst [vmem:[#allocation2 + $0x34] sm:$0xf] %v458
    %475 = vst [vmem:[#allocation2 + $0x38] sm:$0xf] %v459
    %476 = vst [vmem:[#allocation2 + $0x3c] sm:$0xf] %v460
    // Predicated region
    $region22: #{tpu_custom_call.1} parent=1 // pred_check
      _
    $region23: #{tpu_custom_call.1} parent=1 // pred_check_branch
      %478 = sbr.rel (0) target = $region25
    $region24: #{tpu_custom_call.1} parent=1 // pred_region
      %480 = vsyncadd [#allocation3], 0
      %s481 = sshll.u32 [#allocation2], 4
      %s482 = int_to_ptr.vmem [resolvable:$true] %s481
      %s483 = sshll.u32 %s5, 4
      %s484 = int_to_ptr.hbm [resolvable:$true] %s483
      %489 = dma.vmem_to_hbm [thread:$0]  %s482, 1024, %s484, [#allocation3], 64, 64, 4
    $region25: #{tpu_custom_call.1} parent=1 // pred_fallthru
      _
    // Predicated region
    $region26: #{tpu_custom_call.1} parent=1 // pred_check
      _
    $region27: #{tpu_custom_call.1} parent=1 // pred_check_branch
      %491 = sbr.rel (0) target = $region29
    $region28: #{tpu_custom_call.1} parent=1 // pred_region
      %493 = dma.done [#allocation3], 1024
    $region29: #{tpu_custom_call.1} parent=1 // pred_fallthru
      _
    %494 = vsyncpa [#allocation3], 1

</llo_original>
